<compile_context>
chip_gen: v6e
topology: v6e:2x2x1
jax: 0.10.0
libtpu: 0.0.40
codegen_flags: <defaults>
</compile_context>

<pallas_src>
import functools

import jax
import jax.numpy as jnp
from jax.experimental import pallas as pl
from jax.experimental.pallas import tpu as pltpu

EPS = 1e-6


def _residual_kernel(x_ref, alpha_ref, lnb_ref, w_ref, b_ref, o_ref,
                     normed_ref, *, approx_recip: bool):
    # x_ref:      (TR, F)   full feature width (needed for the row-wise reduction)
    # alpha/lnb:  (1, F)
    # w_ref:      (F, TN)   one column tile of the weight (already in mxu_dtype)
    # b_ref:      (1, TN)
    # o_ref:      (TR, TN)
    # normed_ref: (TR, F)   VMEM scratch in the matmul-operand dtype
    j = pl.program_id(1)

    # ---- LayerNorm: compute once per row tile (single-pass stats), reuse over N ----
    @pl.when(j == 0)
    def _():
        x = x_ref[...].astype(jnp.float32)
        f = x.shape[-1]
        s1 = jnp.sum(x, axis=-1, keepdims=True)
        s2 = jnp.sum(x * x, axis=-1, keepdims=True)
        mean = s1 * (1.0 / f)
        # torch.Tensor.std uses the unbiased estimator (ddof=1); eps is added to std.
        var_unbiased = jnp.maximum(s2 - s1 * mean, 0.0) * (1.0 / (f - 1))
        denom = jnp.sqrt(var_unbiased) + EPS
        # Note: zero-padded rows hit denom == EPS; diff == 0 there, so the product is
        # 0 (finite) even with the approx reciprocal, and those rows are sliced off.
        if approx_recip:
            inv = pl.reciprocal(denom, approx=True)   # EUP slot (off the VALU path)
        else:
            inv = 1.0 / denom                         # exact (matches reference)
        normed = (alpha_ref[...].astype(jnp.float32) * ((x - mean) * inv)
                  + lnb_ref[...].astype(jnp.float32))
        normed_ref[...] = normed.astype(normed_ref.dtype)

    # ---- sublayer: Linear(F -> TN column tile) on the MXU (f32 accumulation) ----
    y = jnp.dot(normed_ref[...], w_ref[...], preferred_element_type=jnp.float32)
    y = y + b_ref[...].astype(jnp.float32)

    # ---- dropout (inference mode == identity) + residual add ----
    tn = o_ref.shape[-1]
    col = pl.multiple_of(j * tn, tn)
    x_res = x_ref[:, pl.ds(col, tn)].astype(jnp.float32)
    o_ref[...] = (x_res + y).astype(o_ref.dtype)


def residual_connection(x, alpha, ln_bias, w, b, *,
                        tile_rows=1024, tile_n=512,
                        mxu_dtype=jnp.bfloat16, approx_recip=True):
    """x: (batch, seq, F). Returns x + Linear(LayerNorm(x)) (dropout in eval mode)."""
    batch, seq, feat = x.shape
    rows = batch * seq

    # ---- per-generation VMEM capacity (v5e/v6e: 128 MiB, v7x: 64 MiB per TC) ----
    try:
        vmem_cap = int(pltpu.get_tpu_info().vmem_capacity_bytes)
    except Exception:
        vmem_cap = 64 * 1024 * 1024          # conservative fallback (v7x minimum)
    budget = int(0.65 * vmem_cap)            # working-set target (leaves headroom)

    ib = x.dtype.itemsize
    wb = jnp.dtype(mxu_dtype).itemsize

    # ---- N tile: lane-dense multiple of 128 that divides F ----
    if feat % 128 == 0:
        tn_candidates = sorted({t for t in range(128, feat + 1, 128) if feat % t == 0},
                               reverse=True)
    else:
        tn_candidates = [feat]  # small / unaligned hidden size: one full-width tile
    tn = next((t for t in tn_candidates if t <= max(tile_n, 128)), tn_candidates[-1])

    # ---- row tile: as large as requested, sublane-pack aligned, clamped ----
    sub = 16 if x.dtype == jnp.bfloat16 else 8
    tr = min(tile_rows, pl.cdiv(rows, sub) * sub)
    tr = max(sub, (tr // sub) * sub)

    def vmem_need(tr_, tn_, w_bufs=2):
        return (2 * tr_ * feat * ib          # x tile, double-buffered
                + w_bufs * feat * tn_ * wb   # W column tile
                + 2 * tr_ * tn_ * ib         # out tile, double-buffered
                + tr_ * feat * wb            # normed scratch
                + 2 * tr_ * feat * 4         # LN f32 elementwise temporaries
                + 2 * 3 * feat * 4)          # alpha / LN bias / linear bias

    # Shrink tr, then tn, until the working set fits the per-generation budget.
    while vmem_need(tr, tn) > budget and tr > sub:
        tr = max(sub, ((tr // 2) // sub) * sub)
    if vmem_need(tr, tn) > budget:
        for t in tn_candidates:              # descending: largest tn that still fits
            if vmem_need(tr, t) <= budget:
                tn = t
                break
        else:
            tn = tn_candidates[-1]

    rows_p = pl.cdiv(rows, tr) * tr
    grid_i, grid_j = rows_p // tr, feat // tn

    # Triple-buffer the W stream (the only heavy per-j input) when budget allows.
    w_buffers = 3 if (grid_j > 1 and vmem_need(tr, tn, w_bufs=3) <= budget) else 2

    x2 = x.reshape(rows, feat)
    if rows_p != rows:
        # Zero padding is safe: see the padded-row note inside the kernel.
        x2 = jnp.pad(x2, ((0, rows_p - rows), (0, 0)))

    alpha2 = alpha.reshape(1, feat).astype(jnp.float32)
    lnb2 = ln_bias.reshape(1, feat).astype(jnp.float32)
    b2 = b.reshape(1, feat).astype(jnp.float32)
    w_mxu = w.astype(mxu_dtype)              # bf16 DMA + native MXU path by default

    # ---- explicit VMEM budget: ~1.2x real need + internal scratch, capped at ~88% ----
    need = vmem_need(tr, tn, w_bufs=w_buffers)
    vmem_limit = int(min(int(0.88 * vmem_cap), int(1.2 * need) + (2 << 20)))
    vmem_limit = max(vmem_limit, 16 << 20)

    cost = pl.CostEstimate(
        flops=int(2 * rows_p * feat * feat + 10 * rows_p * feat),
        transcendentals=int(rows_p * (2 if approx_recip else 1)),
        bytes_accessed=int(rows_p * feat * ib                 # x read
                           + grid_i * feat * feat * wb        # W (re-read per row tile)
                           + rows_p * feat * ib               # out write
                           + 3 * feat * 4),
    )

    w_spec = pl.BlockSpec((feat, tn), lambda i, j: (0, j))
    if w_buffers == 3:
        w_spec = pl.BlockSpec((feat, tn), lambda i, j: (0, j),
                              pipeline_mode=pl.Buffered(3))

    kernel = functools.partial(_residual_kernel, approx_recip=approx_recip)
    out = pl.pallas_call(
        kernel,
        out_shape=jax.ShapeDtypeStruct((rows_p, feat), x.dtype),
        grid_spec=pltpu.PrefetchScalarGridSpec(
            num_scalar_prefetch=0,
            grid=(grid_i, grid_j),
            in_specs=[
                pl.BlockSpec((tr, feat), lambda i, j: (i, 0)),   # x (full width)
                pl.BlockSpec((1, feat), lambda i, j: (0, 0)),    # LN alpha
                pl.BlockSpec((1, feat), lambda i, j: (0, 0)),    # LN bias
                w_spec,                                          # W column tile
                pl.BlockSpec((1, tn), lambda i, j: (0, j)),      # linear bias tile
            ],
            out_specs=pl.BlockSpec((tr, tn), lambda i, j: (i, j)),
            scratch_shapes=[pltpu.VMEM((tr, feat), mxu_dtype)],
        ),
        compiler_params=pltpu.CompilerParams(
            dimension_semantics=("parallel", "arbitrary"),
            vmem_limit_bytes=vmem_limit,
        ),
        cost_estimate=cost,
    )(x2, alpha2, lnb2, w_mxu, b2)
    return out[:rows].reshape(batch, seq, feat)


def reference(x, alpha, ln_bias, w, b):
    xf = x.astype(jnp.float32)
    mean = jnp.mean(xf, axis=-1, keepdims=True)
    diff = xf - mean
    std = jnp.sqrt(jnp.sum(diff * diff, axis=-1, keepdims=True) / (xf.shape[-1] - 1))
    normed = alpha * diff / (std + EPS) + ln_bias
    y = normed @ w.astype(jnp.float32) + b
    return xf + y


if __name__ == "__main__":
    # Small but lane-dense shapes (feature dim kept >= 128 per perf guidance).
    batch, seq, feat = 2, 8, 128

    key = jax.random.PRNGKey(0)
    kx, kw = jax.random.split(key)

    x = jax.random.normal(kx, (batch, seq, feat), dtype=jnp.float32)

    # LayerNormalization params (PyTorch init: alpha = ones, bias = zeros)
    alpha = jnp.ones((feat,), dtype=jnp.float32)
    ln_bias = jnp.zeros((feat,), dtype=jnp.float32)

    # Synthetic sublayer: deterministic Linear(feat -> feat)
    w = (jax.random.normal(kw, (feat, feat), dtype=jnp.float32)
         / jnp.sqrt(jnp.float32(feat)))
    b = jnp.zeros((feat,), dtype=jnp.float32)

    # --- exact f32 path (validation-only): tight check against the reference ---
    out = residual_connection(x, alpha, ln_bias, w, b,
                              mxu_dtype=jnp.float32, approx_recip=False)
    out = jax.block_until_ready(out)
    ref = reference(x, alpha, ln_bias, w, b).astype(x.dtype)
    assert out.shape == (batch, seq, feat)
    assert jnp.allclose(out, ref, atol=1e-4, rtol=1e-4), \
        f"max abs err {jnp.max(jnp.abs(out - ref))}"

    # --- bf16 MXU fast path (production defaults): looser check ---
    xb = x.astype(jnp.bfloat16)
    out_b = residual_connection(xb, alpha, ln_bias, w, b)   # bf16 MXU + approx recip
    out_b = jax.block_until_ready(out_b)
    ref_b = reference(xb.astype(jnp.float32), alpha, ln_bias, w, b)
    assert jnp.allclose(out_b.astype(jnp.float32), ref_b, atol=1e-1, rtol=1e-1), \
        f"bf16 max abs err {jnp.max(jnp.abs(out_b.astype(jnp.float32) - ref_b))}"

    print("KERNEL_OK")
</pallas_src>

<mosaic_0001>
module attributes {stable_mosaic.version = 11 : i64} {
  func.func @_residual_kernel(%arg0: i32, %arg1: i32, %arg2: memref<16x128xf32, #tpu.memory_space<vmem>>, %arg3: memref<1x128xf32, #tpu.memory_space<vmem>>, %arg4: memref<1x128xf32, #tpu.memory_space<vmem>>, %arg5: memref<128x128xf32, #tpu.memory_space<vmem>>, %arg6: memref<1x128xf32, #tpu.memory_space<vmem>>, %arg7: memref<16x128xf32, #tpu.memory_space<vmem>>, %arg8: memref<16x128xf32, #tpu.memory_space<vmem>>) attributes {dimension_semantics = [#tpu.dimension_semantics<parallel>, #tpu.dimension_semantics<arbitrary>], iteration_bounds = array<i64: 1, 1>, scalar_prefetch = 0 : i64, scratch_operands = 1 : i64, tpu.core_type = #tpu.core_type<tc>, window_params = [{transform_indices = @transform_0, window_bounds = array<i64: 16, 128>}, {pipeline_mode = #tpu.pipeline_mode<synchronous>, transform_indices = @transform_1, window_bounds = array<i64: 1, 128>}, {pipeline_mode = #tpu.pipeline_mode<synchronous>, transform_indices = @transform_2, window_bounds = array<i64: 1, 128>}, {transform_indices = @transform_3, window_bounds = array<i64: 128, 128>}, {transform_indices = @transform_4, window_bounds = array<i64: 1, 128>}, {transform_indices = @transform_5, window_bounds = array<i64: 16, 128>}]} {
    %c0_i32 = arith.constant 0 : i32
    %0 = arith.cmpi eq, %arg1, %c0_i32 : i32
    %1 = arith.extui %0 : i1 to i32
    %c0_i32_0 = arith.constant 0 : i32
    %2 = arith.cmpi ne, %1, %c0_i32_0 : i32
    scf.if %2 {
      %c0_9 = arith.constant 0 : index
      %c0_10 = arith.constant 0 : index
      %15 = vector.load %arg2[%c0_9, %c0_10] : memref<16x128xf32, #tpu.memory_space<vmem>>, vector<16x128xf32>
      %cst_11 = arith.constant dense<0.000000e+00> : vector<16xf32>
      %16 = vector.multi_reduction <add>, %15, %cst_11 [1] : vector<16x128xf32> to vector<16xf32>
      %17 = vector.shape_cast %16 : vector<16xf32> to vector<16x1xf32>
      %18 = arith.mulf %15, %15 : vector<16x128xf32>
      %cst_12 = arith.constant dense<0.000000e+00> : vector<16xf32>
      %19 = vector.multi_reduction <add>, %18, %cst_12 [1] : vector<16x128xf32> to vector<16xf32>
      %20 = vector.shape_cast %19 : vector<16xf32> to vector<16x1xf32>
      %cst_13 = arith.constant 7.812500e-03 : f32
      %21 = vector.broadcast %cst_13 : f32 to vector<16x1xf32>
      %22 = arith.mulf %17, %21 : vector<16x1xf32>
      %23 = arith.mulf %17, %22 : vector<16x1xf32>
      %24 = arith.subf %20, %23 : vector<16x1xf32>
      %cst_14 = arith.constant 0.000000e+00 : f32
      %25 = vector.broadcast %cst_14 : f32 to vector<16x1xf32>
      %26 = arith.maximumf %24, %25 : vector<16x1xf32>
      %cst_15 = arith.constant 0.00787401571 : f32
      %27 = vector.broadcast %cst_15 : f32 to vector<16x1xf32>
      %28 = arith.mulf %26, %27 : vector<16x1xf32>
      %29 = math.sqrt %28 : vector<16x1xf32>
      %cst_16 = arith.constant 9.99999997E-7 : f32
      %30 = vector.broadcast %cst_16 : f32 to vector<16x1xf32>
      %31 = arith.addf %29, %30 : vector<16x1xf32>
      %cst_17 = arith.constant 1.000000e+00 : f32
      %32 = vector.broadcast %cst_17 : f32 to vector<16x1xf32>
      %33 = arith.divf %32, %31 : vector<16x1xf32>
      %c0_18 = arith.constant 0 : index
      %c0_19 = arith.constant 0 : index
      %34 = vector.load %arg3[%c0_18, %c0_19] : memref<1x128xf32, #tpu.memory_space<vmem>>, vector<1x128xf32>
      %35 = vector.broadcast %22 : vector<16x1xf32> to vector<16x128xf32>
      %36 = arith.subf %15, %35 : vector<16x128xf32>
      %37 = vector.broadcast %33 : vector<16x1xf32> to vector<16x128xf32>
      %38 = arith.mulf %36, %37 : vector<16x128xf32>
      %39 = vector.broadcast %34 : vector<1x128xf32> to vector<16x128xf32>
      %40 = arith.mulf %39, %38 : vector<16x128xf32>
      %c0_20 = arith.constant 0 : index
      %c0_21 = arith.constant 0 : index
      %41 = vector.load %arg4[%c0_20, %c0_21] : memref<1x128xf32, #tpu.memory_space<vmem>>, vector<1x128xf32>
      %42 = vector.broadcast %41 : vector<1x128xf32> to vector<16x128xf32>
      %43 = arith.addf %40, %42 : vector<16x128xf32>
      %c0_22 = arith.constant 0 : index
      %c0_23 = arith.constant 0 : index
      %44 = vector.load %arg8[%c0_22, %c0_23] : memref<16x128xf32, #tpu.memory_space<vmem>>, vector<16x128xf32>
      tpu.vector_store %arg8[%c0_22, %c0_23], %43 {strides = array<i32>} : memref<16x128xf32, #tpu.memory_space<vmem>>, vector<16x128xf32>,
    } else {
    }
    %c0 = arith.constant 0 : index
    %c0_1 = arith.constant 0 : index
    %3 = vector.load %arg8[%c0, %c0_1] : memref<16x128xf32, #tpu.memory_space<vmem>>, vector<16x128xf32>
    %c0_2 = arith.constant 0 : index
    %c0_3 = arith.constant 0 : index
    %4 = vector.load %arg5[%c0_2, %c0_3] : memref<128x128xf32, #tpu.memory_space<vmem>>, vector<128x128xf32>
    %cst = arith.constant dense<0.000000e+00> : vector<16x128xf32>
    %5 = tpu.matmul %3, %4, %cst {dimension_numbers = #tpu.dot_dimension_numbers<[1], [0], [0], [1], [0, 0, 1, 1], [], []>} : vector<16x128xf32>, vector<128x128xf32>, vector<16x128xf32> -> vector<16x128xf32>
    %c0_4 = arith.constant 0 : index
    %c0_5 = arith.constant 0 : index
    %6 = vector.load %arg6[%c0_4, %c0_5] : memref<1x128xf32, #tpu.memory_space<vmem>>, vector<1x128xf32>
    %7 = vector.broadcast %6 : vector<1x128xf32> to vector<16x128xf32>
    %8 = arith.addf %5, %7 : vector<16x128xf32>
    %c128_i32 = arith.constant 128 : i32
    %9 = arith.muli %arg1, %c128_i32 : i32
    %10 = tpu.assume_multiple %9, 128 : i32
    %c0_6 = arith.constant 0 : index
    %11 = arith.index_cast %10 : i32 to index
    %12 = vector.load %arg2[%c0_6, %11] : memref<16x128xf32, #tpu.memory_space<vmem>>, vector<16x128xf32>
    %13 = arith.addf %12, %8 : vector<16x128xf32>
    %c0_7 = arith.constant 0 : index
    %c0_8 = arith.constant 0 : index
    %14 = vector.load %arg7[%c0_7, %c0_8] : memref<16x128xf32, #tpu.memory_space<vmem>>, vector<16x128xf32>
    tpu.vector_store %arg7[%c0_7, %c0_8], %13 {strides = array<i32>} : memref<16x128xf32, #tpu.memory_space<vmem>>, vector<16x128xf32>,
    return
  }
  func.func @transform_0(%arg0: i32, %arg1: i32) -> (i32, i32) {
    %c0_i32 = arith.constant 0 : i32
    %c0_i32_0 = arith.constant 0 : i32
    return %arg0, %c0_i32 : i32, i32
  }
  func.func @transform_1(%arg0: i32, %arg1: i32) -> (i32, i32) {
    %c0_i32 = arith.constant 0 : i32
    %c0_i32_0 = arith.constant 0 : i32
    %c0_i32_1 = arith.constant 0 : i32
    return %c0_i32, %c0_i32_0 : i32, i32
  }
  func.func @transform_2(%arg0: i32, %arg1: i32) -> (i32, i32) {
    %c0_i32 = arith.constant 0 : i32
    %c0_i32_0 = arith.constant 0 : i32
    %c0_i32_1 = arith.constant 0 : i32
    return %c0_i32, %c0_i32_0 : i32, i32
  }
  func.func @transform_3(%arg0: i32, %arg1: i32) -> (i32, i32) {
    %c0_i32 = arith.constant 0 : i32
    %c0_i32_0 = arith.constant 0 : i32
    return %c0_i32, %arg1 : i32, i32
  }
  func.func @transform_4(%arg0: i32, %arg1: i32) -> (i32, i32) {
    %c0_i32 = arith.constant 0 : i32
    %c0_i32_0 = arith.constant 0 : i32
    return %c0_i32, %arg1 : i32, i32
  }
  func.func @transform_5(%arg0: i32, %arg1: i32) -> (i32, i32) {
    %c0_i32 = arith.constant 0 : i32
    return %arg0, %arg1 : i32, i32
  }
}

</mosaic_0001>

<llo_original>
// kernel: tpu_custom_call.1
$region0: #{tpu_custom_call.1}
  #allocation0 [shape = 'u32[]', space=smem, size = 0x4, offset = 0x4, fixed_abs, tag = 'smem constant byte address 0x4 - core index']
  #allocation1 [shape = 'u32[144,128]{1,0:T(1,128)}', space=vmem, size = 0x12000, scoped, tag = 'internal scratch']
  #allocation2 [shape = 'f32[16,128]{1,0:T(8,128)}', space=vmem, size = 0x2000, scoped, tag = 'scratch operand']
  %s0 = inlined_call_operand.hbm [shape: f32[16,128], index: 0, kind: input, shape index: {}]
  %s1 = inlined_call_operand.vmem [shape: f32[1,128], index: 1, kind: input, shape index: {}]
  %s2 = inlined_call_operand.vmem [shape: f32[1,128], index: 2, kind: input, shape index: {}]
  %s3 = inlined_call_operand.hbm [shape: f32[128,128], index: 3, kind: input, shape index: {}]
  %s4 = inlined_call_operand.vmem [shape: f32[1,128], index: 4, kind: input, shape index: {}]
  %s5 = inlined_call_operand.hbm [shape: f32[16,128], index: 5, kind: output, shape index: {}]
  %s6 = sld [smem:[#allocation0]]
  $region42: #{tpu_custom_call.1} parent=0
    _
  %s8 = ssub.s32 1, %s6
  %s9 = scalar_select 0, %s8, %s6
  $region1: #{tpu_custom_call.1} parent=0
    #allocation3 [shape = 'u8[8192]{0}', space=vmem, size = 0x2000, scoped, tag = 'input window, operand 0, single buffered']
    #allocation4 [shape = 's32[1]{0}', space=sflag, size = 0x4, scoped, tag = 'scoped memory for tpu_custom_call.1']
    #allocation5 [shape = 's32[1]{0}', space=sflag, size = 0x4, scoped, tag = 'scoped memory for tpu_custom_call.1']
    #allocation6 [shape = 'u8[65536]{0}', space=vmem, size = 0x10000, scoped, tag = 'input window, operand 3, single buffered']
    #allocation7 [shape = 's32[1]{0}', space=sflag, size = 0x4, scoped, tag = 'scoped memory for tpu_custom_call.1']
    #allocation8 [shape = 'u8[8192]{0}', space=vmem, size = 0x2000, scoped, tag = 'output window, operand 0, single buffered']
    %10 = vsyncpa [#allocation4], 0
    %11 = vsyncpa [#allocation7], 0
    %12 = vsyncpa [#allocation5], 0
    // Predicated region
    $region2: #{tpu_custom_call.1} parent=1 // pred_check
      _
    $region3: #{tpu_custom_call.1} parent=1 // pred_check_branch
      %14 = sbr.rel (0) target = $region5
    $region4: #{tpu_custom_call.1} parent=1 // pred_region
      %s16 = ssub.s32 256, 256
      %17 = vsyncadd [#allocation4], %s16
      %s18 = sshll.u32 [#allocation3], 4
      %s19 = int_to_ptr.vmem [resolvable:$true] %s18
      %24 = dma.hbm_to_vmem [thread:$0]  %s0, 256, %s19, [#allocation4], 128, 128, 8
    $region5: #{tpu_custom_call.1} parent=1 // pred_fallthru
      _
    // Predicated region
    $region6: #{tpu_custom_call.1} parent=1 // pred_check
      _
    $region7: #{tpu_custom_call.1} parent=1 // pred_check_branch
      %26 = sbr.rel (0) target = $region9
    $region8: #{tpu_custom_call.1} parent=1 // pred_region
      _
    $region9: #{tpu_custom_call.1} parent=1 // pred_fallthru
      _
    // Predicated region
    $region10: #{tpu_custom_call.1} parent=1 // pred_check
      _
    $region11: #{tpu_custom_call.1} parent=1 // pred_check_branch
      %28 = sbr.rel (0) target = $region13
    $region12: #{tpu_custom_call.1} parent=1 // pred_region
      _
    $region13: #{tpu_custom_call.1} parent=1 // pred_fallthru
      _
    // Predicated region
    $region14: #{tpu_custom_call.1} parent=1 // pred_check
      _
    $region15: #{tpu_custom_call.1} parent=1 // pred_check_branch
      %30 = sbr.rel (0) target = $region17
    $region16: #{tpu_custom_call.1} parent=1 // pred_region
      %s32 = ssub.s32 2048, 2048
      %33 = vsyncadd [#allocation7], %s32
      %s34 = sshll.u32 [#allocation6], 4
      %s35 = int_to_ptr.vmem [resolvable:$true] %s34
      %40 = dma.hbm_to_vmem [thread:$0]  %s3, 2048, %s35, [#allocation7], 128, 128, 8
    $region17: #{tpu_custom_call.1} parent=1 // pred_fallthru
      _
    // Predicated region
    $region18: #{tpu_custom_call.1} parent=1 // pred_check
      _
    $region19: #{tpu_custom_call.1} parent=1 // pred_check_branch
      %42 = sbr.rel (0) target = $region21
    $region20: #{tpu_custom_call.1} parent=1 // pred_region
      _
    $region21: #{tpu_custom_call.1} parent=1 // pred_fallthru
      _
    // Predicated region
    $region22: #{tpu_custom_call.1} parent=1 // pred_check
      _
    $region23: #{tpu_custom_call.1} parent=1 // pred_check_branch
      %44 = sbr.rel (0) target = $region25
    $region24: #{tpu_custom_call.1} parent=1 // pred_region
      %45 = dma.done [#allocation4], 256
    $region25: #{tpu_custom_call.1} parent=1 // pred_fallthru
      _
    // Predicated region
    $region26: #{tpu_custom_call.1} parent=1 // pred_check
      _
    $region27: #{tpu_custom_call.1} parent=1 // pred_check_branch
      %47 = sbr.rel (0) target = $region29
    $region28: #{tpu_custom_call.1} parent=1 // pred_region
      %48 = dma.done [#allocation7], 2048
    $region29: #{tpu_custom_call.1} parent=1 // pred_fallthru
      _
    %p49 = scmp.eq.s32.totalorder 0, 0
    // Predicated region
    $region30: #{tpu_custom_call.1} parent=1 // pred_check
      %p50 = pneg %p49
    $region31: #{tpu_custom_call.1} parent=1 // pred_check_branch
      %52 = sbr.rel (%p50) target = $region33
    $region32: #{tpu_custom_call.1} parent=1 // pred_region
      %v53 = vld [vmem:[#allocation3] sm:$0xff]
      %v54 = vld [vmem:[#allocation3 + $0x8] sm:$0xff]
      %55 = vadd.xlane.f32.xlu0 %v53
      %v56 = vpop.xlane.xlu0 %55
      %57 = vadd.xlane.f32.xlu0 %v54
      %v58 = vpop.xlane.xlu0 %57
      %v59 = vmul.f32 %v53, %v53
      %v60 = vmul.f32 %v54, %v54
      %61 = vadd.xlane.f32.xlu0 %v59
      %v62 = vpop.xlane.xlu0 %61
      %63 = vadd.xlane.f32.xlu0 %v60
      %v64 = vpop.xlane.xlu0 %63
      %v65 = vmul.f32 %v56, 0.0078125
      %v66 = vmul.f32 %v58, 0.0078125
      %v67 = vmul.f32 %v56, %v65
      %v68 = vmul.f32 %v58, %v66
      %v69 = vsub.f32 %v62, %v67
      %v70 = vsub.f32 %v64, %v68
      %v71 = vmax.f32 %v69, 0.0
      %v72 = vmax.f32 %v70, 0.0
      %v73 = vmul.f32 %v71, 0.007874016
      %v74 = vmul.f32 %v72, 0.007874016
      %v75 = vrsqrt.pop %v73
      %v76 = vmul.f32 %v73, %v75
      %vm77 = vcmp.eq.f32.partialorder %v73, inf
      %v78 = vsel %vm77, %v73, %v76
      %vm79 = vcmp.eq.f32.partialorder %v73, 0.0
      %v80 = vand.u32 %v73, 2147483648
      %v81 = vsel %vm79, %v80, %v78
      %v82 = vrsqrt.pop %v74
      %v83 = vmul.f32 %v74, %v82
      %vm84 = vcmp.eq.f32.partialorder %v74, inf
      %v85 = vsel %vm84, %v74, %v83
      %vm86 = vcmp.eq.f32.partialorder %v74, 0.0
      %v87 = vand.u32 %v74, 2147483648
      %v88 = vsel %vm86, %v87, %v85
      %v89 = vadd.f32 %v81, 1e-06
      %v90 = vadd.f32 %v88, 1e-06
      %v91 = vrcp.pop %v89
      %v92 = vmul.f32 1.0, %v91
      %v93 = vrcp.pop %v90
      %v94 = vmul.f32 1.0, %v93
      %v95 = vld [vmem:[%s1] sm:$0x1]
      %v96 = vsub.f32 %v53, %v65
      %v97 = vsub.f32 %v54, %v66
      %v98 = vmul.f32 %v96, %v92
      %v99 = vmul.f32 %v97, %v94
      %v101 = vlaneseq
      %v102 = vshrl.u32 %v101, 7
      %v103 = vsub.s32 0, %v102
      %v104 = vrot.slane %v95, %v103
      %v106 = vmul.f32 %v104, %v98
      %v107 = vmul.f32 %v104, %v99
      %v108 = vld [vmem:[%s2] sm:$0x1]
      %v110 = vlaneseq
      %v111 = vshrl.u32 %v110, 7
      %v112 = vsub.s32 0, %v111
      %v113 = vrot.slane %v108, %v112
      %v115 = vadd.f32 %v106, %v113
      %v116 = vadd.f32 %v107, %v113
      %117 = vst [vmem:[#allocation2] sm:$0xff] %v115
      %118 = vst [vmem:[#allocation2 + $0x8] sm:$0xff] %v116
    $region33: #{tpu_custom_call.1} parent=1 // pred_fallthru
      _
    %v119 = vld [vmem:[#allocation2] sm:$0xff]
    %v120 = vld [vmem:[#allocation2 + $0x8] sm:$0xff]
    %v121 = vld [vmem:[#allocation6] sm:$0xff]
    %v122 = vld [vmem:[#allocation6 + $0x8] sm:$0xff]
    %v123 = vld [vmem:[#allocation6 + $0x10] sm:$0xff]
    %v124 = vld [vmem:[#allocation6 + $0x18] sm:$0xff]
    %v125 = vld [vmem:[#allocation6 + $0x20] sm:$0xff]
    %v126 = vld [vmem:[#allocation6 + $0x28] sm:$0xff]
    %v127 = vld [vmem:[#allocation6 + $0x30] sm:$0xff]
    %v128 = vld [vmem:[#allocation6 + $0x38] sm:$0xff]
    %v129 = vld [vmem:[#allocation6 + $0x40] sm:$0xff]
    %v130 = vld [vmem:[#allocation6 + $0x48] sm:$0xff]
    %v131 = vld [vmem:[#allocation6 + $0x50] sm:$0xff]
    %v132 = vld [vmem:[#allocation6 + $0x58] sm:$0xff]
    %v133 = vld [vmem:[#allocation6 + $0x60] sm:$0xff]
    %v134 = vld [vmem:[#allocation6 + $0x68] sm:$0xff]
    %v135 = vld [vmem:[#allocation6 + $0x70] sm:$0xff]
    %v136 = vld [vmem:[#allocation6 + $0x78] sm:$0xff]
    %v137 = vld [vmem:[%s4] sm:$0x1]
    %v139 = vlaneseq
    %v140 = vshrl.u32 %v139, 7
    %v141 = vsub.s32 0, %v140
    %v142 = vrot.slane %v137, %v141
    %144 = vmatprep.subr.mxu0 0.0
    %145 = vmatpush1.msra.mxu0 %v136
    %146 = vmatprep.subr.mxu0 0.0
    %147 = vmatpush1.msra.mxu0 %v135
    %148 = vmatprep.subr.mxu0 0.0
    %149 = vmatpush1.msra.mxu0 %v134
    %150 = vmatprep.subr.mxu0 0.0
    %151 = vmatpush1.msra.mxu0 %v133
    %152 = vmatprep.subr.mxu0 0.0
    %153 = vmatpush1.msra.mxu0 %v132
    %154 = vmatprep.subr.mxu0 0.0
    %155 = vmatpush1.msra.mxu0 %v131
    %156 = vmatprep.subr.mxu0 0.0
    %157 = vmatpush1.msra.mxu0 %v130
    %158 = vmatprep.subr.mxu0 0.0
    %159 = vmatpush1.msra.mxu0 %v129
    %160 = vmatprep.subr.mxu0 0.0
    %161 = vmatpush1.msra.mxu0 %v128
    %162 = vmatprep.subr.mxu0 0.0
    %163 = vmatpush1.msra.mxu0 %v127
    %164 = vmatprep.subr.mxu0 0.0
    %165 = vmatpush1.msra.mxu0 %v126
    %166 = vmatprep.subr.mxu0 0.0
    %167 = vmatpush1.msra.mxu0 %v125
    %168 = vmatprep.subr.mxu0 0.0
    %169 = vmatpush1.msra.mxu0 %v124
    %170 = vmatprep.subr.mxu0 0.0
    %171 = vmatpush1.msra.mxu0 %v123
    %172 = vmatprep.subr.mxu0 0.0
    %173 = vmatpush1.msra.mxu0 %v122
    %174 = vmatprep.subr.mxu0 0.0
    %175 = vmatpush1.msra.mxu0 %v121
    %176 = vmatprep.subr.mxu0 0.0
    %177 = vmatpush2.msra.mxu0 0.0
    %178 = vmatprep.subr.mxu0 0.0
    %179 = vmatpush2.msra.mxu0 0.0
    %180 = vmatprep.subr.mxu0 0.0
    %181 = vmatpush2.msra.mxu0 0.0
    %182 = vmatprep.subr.mxu0 0.0
    %183 = vmatpush2.msra.mxu0 0.0
    %184 = vmatprep.subr.mxu0 0.0
    %185 = vmatpush2.msra.mxu0 0.0
    %186 = vmatprep.subr.mxu0 0.0
    %187 = vmatpush2.msra.mxu0 0.0
    %188 = vmatprep.subr.mxu0 0.0
    %189 = vmatpush2.msra.mxu0 0.0
    %190 = vmatprep.subr.mxu0 0.0
    %191 = vmatpush2.msra.mxu0 0.0
    %192 = vmatprep.subr.mxu0 0.0
    %193 = vmatpush2.msra.mxu0 0.0
    %194 = vmatprep.subr.mxu0 0.0
    %195 = vmatpush2.msra.mxu0 0.0
    %196 = vmatprep.subr.mxu0 0.0
    %197 = vmatpush2.msra.mxu0 0.0
    %198 = vmatprep.subr.mxu0 0.0
    %199 = vmatpush2.msra.mxu0 0.0
    %200 = vmatprep.subr.mxu0 0.0
    %201 = vmatpush2.msra.mxu0 0.0
    %202 = vmatprep.subr.mxu0 0.0
    %203 = vmatpush2.msra.mxu0 0.0
    %204 = vmatprep.subr.mxu0 0.0
    %205 = vmatpush2.msra.mxu0 0.0
    %206 = vmatprep.subr.mxu0 0.0
    %207 = vmatpush2.msra.mxu0 0.0
    %208 = vmatprep.mubr.f32.mxu0 0.0
    %209 = vmatmul.mubr.f32.gmra.mxu0 %v119
    %v210 = vpop.f32.mrf.mxu0
    %v211 = vadd.f32 %v142, %v210
    %v212 = vpop.f32.mrf.mxu0
    %213 = vmatprep.mubr.f32.mxu0 0.0
    %214 = vmatmul.mubr.f32.gmra.mxu0 %v120
    %v215 = vpop.f32.mrf.mxu0
    %v216 = vadd.f32 %v142, %v215
    %v217 = vpop.f32.mrf.mxu0
    %218 = vdwg.mxu0
    %s219 = smul.u32 0, 128
    %s220 = sshra.s32 %s219, 7
    %s221 = sand.u32 %s219, 127
    %s222 = scalar_lea.vmem [#allocation3], %s220
    %v223 = vld [vmem:[%s222] sm:$0xff]
    %v224 = vld [vmem:[%s222 + $0x8] sm:$0xff]
    %v225 = vadd.f32 %v223, %v211
    %v226 = vadd.f32 %v224, %v216
    %227 = vst [vmem:[#allocation8] sm:$0xff] %v225
    %228 = vst [vmem:[#allocation8 + $0x8] sm:$0xff] %v226
    // Predicated region
    $region34: #{tpu_custom_call.1} parent=1 // pred_check
      _
    $region35: #{tpu_custom_call.1} parent=1 // pred_check_branch
      %230 = sbr.rel (0) target = $region37
    $region36: #{tpu_custom_call.1} parent=1 // pred_region
      %s232 = ssub.s32 256, 256
      %233 = vsyncadd [#allocation5], %s232
      %s234 = sshll.u32 [#allocation8], 4
      %s235 = int_to_ptr.vmem [resolvable:$true] %s234
      %240 = dma.vmem_to_hbm [thread:$0]  %s235, 256, %s5, [#allocation5], 128, 128, 8
    $region37: #{tpu_custom_call.1} parent=1 // pred_fallthru
      _
    // Predicated region
    $region38: #{tpu_custom_call.1} parent=1 // pred_check
      _
    $region39: #{tpu_custom_call.1} parent=1 // pred_check_branch
      %242 = sbr.rel (0) target = $region41
    $region40: #{tpu_custom_call.1} parent=1 // pred_region
      %243 = dma.done [#allocation5], 256
    $region41: #{tpu_custom_call.1} parent=1 // pred_fallthru
      _
    %244 = vsyncpa [#allocation4], 1
    %245 = vsyncpa [#allocation7], 1
    %246 = vsyncpa [#allocation5], 1

</llo_original>
